<compile_context>
chip_gen: v7x
topology: tpu7x:2x2x1
jax: 0.10.0
libtpu: 0.0.40
codegen_flags: <defaults>
</compile_context>

<pallas_src>
import functools

import jax
import jax.numpy as jnp
from jax import lax
from jax.experimental import pallas as pl
from jax.experimental.pallas import tpu as pltpu


def _ntxent_kernel(xn_blk_ref, xn_all_ref, part_ref):
    """One row block: part[i] = exp(sim[i, i^1]/T) / (-log(sum_{k!=i} exp(sim[i,k]/T)))."""
    a = xn_blk_ref[...]                    # (TM, D), rows pre-scaled by inv_norm/sqrt(T)
    b = xn_all_ref[...]                    # (N, D), same scaling

    # sim/T for this row block against all rows: one MXU matmul (bf16 operands, f32 acc).
    s = lax.dot_general(a, b, (((1,), (1,)), ((), ())),
                        preferred_element_type=jnp.float32)       # (TM, N)
    e = jnp.exp(s)                                                # EUP, f32
    row_sum = jnp.sum(e, axis=-1, keepdims=True)                  # (TM, 1)

    af = a.astype(jnp.float32)

    # Self term sim[i,i]/T in O(TM*D); subtract from the row sum -> sum over k != i.
    d_self = jnp.sum(af * af, axis=-1, keepdims=True)             # (TM, 1) ~ 1/T
    denom = row_sum - jnp.exp(d_self)
    l2 = -jnp.log(denom)                                          # matches reference __l

    # Positive pair (i, i^1) in O(TM*D) via adjacent-row swap (XLU roll, no N^2 mask).
    # q[i] = <af[i], af[i+1]>; pair dots are symmetric, so odd rows take q[i-1].
    tm = af.shape[0]
    q = jnp.sum(af * pltpu.roll(af, shift=tm - 1, axis=0), axis=-1, keepdims=True)
    row_par = lax.broadcasted_iota(jnp.int32, (tm, 1), 0) % 2
    pos = jnp.where(row_par == 0, q, pltpu.roll(q, shift=1, axis=0))
    e_pos = jnp.exp(pos)                                          # exp(sim[i, i^1]/T)

    part_ref[...] = e_pos * pl.reciprocal(l2, approx=False)       # N divides total, not N^2


def ntxent_loss(feature_mt, temperature=0.5, *, matmul_dtype=jnp.bfloat16,
                block_rows=None):
    n, d = feature_mt.shape
    assert n % 2 == 0, "NT-Xent pairing requires an even number of items"

    x = feature_mt.astype(jnp.float32)
    # Pre-normalize rows and fold 1/T into the operands:
    #   (x_i*inv_i/sqrt(T)) . (x_j*inv_j/sqrt(T)) == cos_sim(i,j)/T
    # (eps: clamps each squared norm at 1e-16 vs. reference's product clamp at 1e-8 —
    #  identical except for near-zero rows.)
    sumsq = jnp.sum(x * x, axis=-1, keepdims=True)
    scale = lax.rsqrt(jnp.maximum(sumsq, 1e-16)) / jnp.sqrt(jnp.float32(temperature))
    xn = (x * scale).astype(matmul_dtype)

    if block_rows is None:
        # Largest candidate dividing N whose (TM x N) f32 e-tile stays well under the
        # scoped-VMEM budget (also fits v7x's smaller VMEM); fall back to a single block.
        block_rows = n
        for cand in (512, 256, 128, 64, 32, 16, 8):
            if n % cand == 0 and cand * n * 4 <= (8 << 20):
                block_rows = cand
                break
    assert n % block_rows == 0 and block_rows % 2 == 0

    grid = (n // block_rows,)
    part = pl.pallas_call(
        _ntxent_kernel,
        out_shape=jax.ShapeDtypeStruct((n, 1), jnp.float32),
        grid_spec=pltpu.PrefetchScalarGridSpec(
            num_scalar_prefetch=0,
            grid=grid,
            in_specs=[
                pl.BlockSpec((block_rows, d), lambda i: (i, 0)),   # LHS row block
                pl.BlockSpec((n, d), lambda i: (0, 0)),            # full RHS, stays resident
            ],
            out_specs=pl.BlockSpec((block_rows, 1), lambda i: (i, 0)),
        ),
        compiler_params=pltpu.CompilerParams(
            # Row blocks are independent -> shard across v7x's 2 TensorCores; harmless on v5e/v6e.
            dimension_semantics=("parallel",),
        ),
    )(xn, xn)

    return jnp.sum(part) / n


def ntxent_ref(x, temperature=0.5):
    """Plain-JAX reference implementing the intended module semantics (f32 throughout)."""
    x = x.astype(jnp.float32)
    n = x.shape[0]
    norms = jnp.sqrt(jnp.sum(x * x, axis=-1, keepdims=True))
    sim = (x @ x.T) / jnp.maximum(norms * norms.T, 1e-8)
    e = jnp.exp(sim / temperature)
    denom = jnp.sum(e, axis=-1) - jnp.diag(e)
    l2 = -jnp.log(denom)
    idx = jnp.arange(n)
    return jnp.sum(e[idx, idx ^ 1] / l2) / n


if __name__ == "__main__":
    key = jax.random.PRNGKey(0)
    items, feat_dim = 16, 32          # items = 2 * batch (SimCLR pairs)
    feature_mt = jax.random.normal(key, (items, feat_dim), dtype=jnp.float32)

    # Default (bf16 MXU operands) path; block_rows=8 exercises a 2-step grid.
    loss = jax.jit(functools.partial(
        ntxent_loss, temperature=0.5, matmul_dtype=jnp.bfloat16, block_rows=8)
    )(feature_mt)
    jax.block_until_ready(loss)

    ref = ntxent_ref(feature_mt, temperature=0.5)
    assert jnp.allclose(loss, ref, atol=2e-2, rtol=2e-2), (loss, ref)

    # f32 operand path: tight check of the restructured math against the reference.
    loss_f32 = jax.jit(functools.partial(
        ntxent_loss, temperature=0.5, matmul_dtype=jnp.float32, block_rows=8)
    )(feature_mt)
    jax.block_until_ready(loss_f32)
    assert jnp.allclose(loss_f32, ref, atol=2e-4, rtol=2e-4), (loss_f32, ref)

    print("KERNEL_OK")
</pallas_src>

<mosaic_0001>
module attributes {stable_mosaic.version = 11 : i64} {
  func.func @_ntxent_kernel(%arg0: i32, %arg1: memref<8x32xbf16, #tpu.memory_space<vmem>>, %arg2: memref<16x32xbf16, #tpu.memory_space<vmem>>, %arg3: memref<8x1xf32, #tpu.memory_space<vmem>>) attributes {dimension_semantics = [#tpu.dimension_semantics<parallel>], iteration_bounds = array<i64: 2>, scalar_prefetch = 0 : i64, scratch_operands = 0 : i64, tpu.core_type = #tpu.core_type<tc>, window_params = [{transform_indices = @transform_0, window_bounds = array<i64: 8, 32>}, {pipeline_mode = #tpu.pipeline_mode<synchronous>, transform_indices = @transform_1, window_bounds = array<i64: 16, 32>}, {transform_indices = @transform_2, window_bounds = array<i64: 8, 1>}]} {
    %c0 = arith.constant 0 : index
    %c0_0 = arith.constant 0 : index
    %0 = vector.load %arg1[%c0, %c0_0] : memref<8x32xbf16, #tpu.memory_space<vmem>>, vector<8x32xbf16>
    %c0_1 = arith.constant 0 : index
    %c0_2 = arith.constant 0 : index
    %1 = vector.load %arg2[%c0_1, %c0_2] : memref<16x32xbf16, #tpu.memory_space<vmem>>, vector<16x32xbf16>
    %cst = arith.constant dense<0.000000e+00> : vector<8x16xf32>
    %2 = tpu.matmul %0, %1, %cst {dimension_numbers = #tpu.dot_dimension_numbers<[1], [1], [0], [0], [0, 0, 1, 0], [], []>} : vector<8x32xbf16>, vector<16x32xbf16>, vector<8x16xf32> -> vector<8x16xf32>
    %3 = math.exp %2 : vector<8x16xf32>
    %cst_3 = arith.constant dense<0.000000e+00> : vector<8xf32>
    %4 = vector.multi_reduction <add>, %3, %cst_3 [1] : vector<8x16xf32> to vector<8xf32>
    %5 = vector.shape_cast %4 : vector<8xf32> to vector<8x1xf32>
    %6 = arith.extf %0 : vector<8x32xbf16> to vector<8x32xf32>
    %7 = arith.mulf %6, %6 : vector<8x32xf32>
    %cst_4 = arith.constant dense<0.000000e+00> : vector<8xf32>
    %8 = vector.multi_reduction <add>, %7, %cst_4 [1] : vector<8x32xf32> to vector<8xf32>
    %9 = vector.shape_cast %8 : vector<8xf32> to vector<8x1xf32>
    %10 = math.exp %9 : vector<8x1xf32>
    %11 = arith.subf %5, %10 : vector<8x1xf32>
    %12 = math.log %11 : vector<8x1xf32>
    %cst_5 = arith.constant 0.000000e+00 : f32
    %13 = vector.broadcast %cst_5 : f32 to vector<8x1xf32>
    %14 = arith.subf %13, %12 : vector<8x1xf32>
    %c7_i32 = arith.constant 7 : i32
    %15 = tpu.dynamic_rotate %6 by %c7_i32 dim 0 : vector<8x32xf32>, i32 -> vector<8x32xf32>
    %16 = arith.mulf %6, %15 : vector<8x32xf32>
    %cst_6 = arith.constant dense<0.000000e+00> : vector<8xf32>
    %17 = vector.multi_reduction <add>, %16, %cst_6 [1] : vector<8x32xf32> to vector<8xf32>
    %18 = vector.shape_cast %17 : vector<8xf32> to vector<8x1xf32>
    %19 = tpu.iota {dimensions = array<i32: 0>} : vector<8x1xi32>
    %c2_i32 = arith.constant 2 : i32
    %c0_i32 = arith.constant 0 : i32
    %20 = arith.cmpi eq, %c2_i32, %c0_i32 : i32
    %c1_i32 = arith.constant 1 : i32
    %21 = arith.select %20, %c1_i32, %c2_i32 : i32
    %22 = vector.broadcast %21 : i32 to vector<8x1xi32>
    %23 = arith.remsi %19, %22 : vector<8x1xi32>
    %c0_i32_7 = arith.constant 0 : i32
    %24 = vector.broadcast %c0_i32_7 : i32 to vector<8x1xi32>
    %25 = arith.cmpi ne, %23, %24 : vector<8x1xi32>
    %c0_i32_8 = arith.constant 0 : i32
    %26 = vector.broadcast %c0_i32_8 : i32 to vector<8x1xi32>
    %27 = arith.cmpi slt, %23, %26 : vector<8x1xi32>
    %c0_i32_9 = arith.constant 0 : i32
    %28 = arith.cmpi slt, %21, %c0_i32_9 : i32
    %29 = vector.broadcast %28 : i1 to vector<8x1xi1>
    %30 = vector.broadcast %29 : vector<8x1xi1> to vector<8x1xi1>
    %31 = arith.xori %27, %30 : vector<8x1xi1>
    %32 = arith.andi %31, %25 : vector<8x1xi1>
    %33 = vector.broadcast %21 : i32 to vector<8x1xi32>
    %34 = arith.addi %23, %33 : vector<8x1xi32>
    %35 = arith.select %32, %34, %23 : vector<8x1xi1>, vector<8x1xi32>
    %c0_i32_10 = arith.constant 0 : i32
    %36 = vector.broadcast %c0_i32_10 : i32 to vector<8x1xi32>
    %37 = arith.cmpi eq, %35, %36 : vector<8x1xi32>
    %c1_i32_11 = arith.constant 1 : i32
    %38 = tpu.dynamic_rotate %18 by %c1_i32_11 dim 0 : vector<8x1xf32>, i32 -> vector<8x1xf32>
    %39 = arith.select %37, %18, %38 : vector<8x1xi1>, vector<8x1xf32>
    %40 = math.exp %39 : vector<8x1xf32>
    %41 = tpu.reciprocal %14 : vector<8x1xf32> -> vector<8x1xf32>
    %42 = arith.mulf %40, %41 : vector<8x1xf32>
    %c0_12 = arith.constant 0 : index
    %c0_13 = arith.constant 0 : index
    %43 = vector.load %arg3[%c0_12, %c0_13] : memref<8x1xf32, #tpu.memory_space<vmem>>, vector<8x1xf32>
    tpu.vector_store %arg3[%c0_12, %c0_13], %42 {strides = array<i32>} : memref<8x1xf32, #tpu.memory_space<vmem>>, vector<8x1xf32>,
    return
  }
  func.func @transform_0(%arg0: i32) -> (i32, i32) {
    %c0_i32 = arith.constant 0 : i32
    %c0_i32_0 = arith.constant 0 : i32
    return %arg0, %c0_i32 : i32, i32
  }
  func.func @transform_1(%arg0: i32) -> (i32, i32) {
    %c0_i32 = arith.constant 0 : i32
    %c0_i32_0 = arith.constant 0 : i32
    %c0_i32_1 = arith.constant 0 : i32
    return %c0_i32, %c0_i32_0 : i32, i32
  }
  func.func @transform_2(%arg0: i32) -> (i32, i32) {
    %c0_i32 = arith.constant 0 : i32
    %c0_i32_0 = arith.constant 0 : i32
    return %arg0, %c0_i32 : i32, i32
  }
}

</mosaic_0001>

<llo_original>
// kernel: ntxent_loss.1
$region0: #{ntxent_loss.1}
  #allocation0 [shape = 'u32[]', space=smem, size = 0x4, offset = 0x4, fixed_abs, tag = 'smem constant byte address 0x4 - core index']
  #allocation1 [shape = 'u32[144,128]{1,0:T(1,128)}', space=vmem, size = 0x12000, scoped, tag = 'internal scratch']
  %s0 = inlined_call_operand.vmem [shape: bf16[16,32], index: 0, kind: input, shape index: {}, may-alias: {0,1}]
  %s1 = inlined_call_operand.vmem [shape: bf16[16,32], index: 1, kind: input, shape index: {}, may-alias: {0,1}]
  %s2 = inlined_call_operand.vmem [shape: f32[16,1], index: 2, kind: output, shape index: {}]
  %s3 = sld [smem:[#allocation0]]
  $region41: #{ntxent_loss.1} parent=0
    _
  %s5 = ssub.s32 1, %s3
  %s6 = scalar_select 0, %s5, %s3
  loop: start=0, step=1, limit=4
  $region2: #{ntxent_loss.1} parent=0 // loop_pre_header
    _
  $region3: #{ntxent_loss.1} parent=0 // loop_header
    %s8 = sphi 0, %s12
    %p9 = scmp.ge.s32.totalorder %s8, 4
    %s18 = sphi 0, %s20
    %s21 = sphi 0, %s18
    %s22 = sphi 0, %s21
    %s38 = sphi 0, %s22
    %s42 = sphi 0, %s42
    %s44 = sphi 0, %s42
    %s45 = sphi 0, %s44
    %s59 = sphi 0, %s45
    %s65 = sphi 0, %s67
    %s68 = sphi 0, %s65
    %s69 = sphi 0, %s68
    %s85 = sphi 0, %s69
  $region4: #{ntxent_loss.1} parent=0 // loop_header_branch
    %11 = sbr.rel (%p9) target = $region8
  $region5: #{ntxent_loss.1} parent=0 // loop_body
    %s13 = ssub.s32 %s8, 1
    %s14 = ssub.s32 %s8, 2
    %s15 = sadd.s32 %s8, 1
    %s16 = ssub.s32 %s8, %s15
    %p17 = scmp.eq.s32.totalorder %s16, 0
    %s19 = sadd.s32 %s18, 1
    %s20 = scalar_select %p17, %s18, %s19
    %p23 = pneg %p17
    %p24 = scmp.eq.s32.totalorder %s8, 1
    %p25 = por %p23, %p24
    %p26 = scmp.ne.s32.totalorder %s18, %s21
    %p27 = scmp.eq.s32.totalorder %s8, 0
    %p28 = por %p26, %p27
    %p29 = scmp.ne.s32.totalorder %s18, %s21
    %p30 = scmp.eq.s32.totalorder %s13, 1
    %p31 = por %p29, %p30
    %p32 = scmp.ne.s32.totalorder %s21, %s22
    %p33 = scmp.eq.s32.totalorder %s13, 0
    %p34 = por %p32, %p33
    %p35 = scmp.ne.s32.totalorder %s21, %s22
    %p36 = scmp.eq.s32.totalorder %s14, 1
    %p37 = por %p35, %p36
    %p39 = scmp.ne.s32.totalorder %s22, %s38
    %p40 = scmp.eq.s32.totalorder %s14, 0
    %p41 = por %p39, %p40
    %s43 = sadd.s32 %s42, 1
    %p46 = scmp.eq.s32.totalorder %s8, 1
    %p47 = scmp.ne.s32.totalorder %s42, %s44
    %p48 = scmp.eq.s32.totalorder %s8, 0
    %p49 = por %p47, %p48
    %p50 = scmp.ne.s32.totalorder %s42, %s44
    %p51 = scmp.eq.s32.totalorder %s13, 1
    %p52 = por %p50, %p51
    %p53 = scmp.ne.s32.totalorder %s44, %s45
    %p54 = scmp.eq.s32.totalorder %s13, 0
    %p55 = por %p53, %p54
    %p56 = scmp.ne.s32.totalorder %s44, %s45
    %p57 = scmp.eq.s32.totalorder %s14, 1
    %p58 = por %p56, %p57
    %p60 = scmp.ne.s32.totalorder %s45, %s59
    %p61 = scmp.eq.s32.totalorder %s14, 0
    %p62 = por %p60, %p61
    %s63 = ssub.s32 %s8, %s15
    %p64 = scmp.eq.s32.totalorder %s63, 0
    %s66 = sadd.s32 %s65, 1
    %s67 = scalar_select %p64, %s65, %s66
    %p70 = pneg %p64
    %p71 = scmp.eq.s32.totalorder %s8, 1
    %p72 = por %p70, %p71
    %p73 = scmp.ne.s32.totalorder %s65, %s68
    %p74 = scmp.eq.s32.totalorder %s8, 0
    %p75 = por %p73, %p74
    %p76 = scmp.ne.s32.totalorder %s65, %s68
    %p77 = scmp.eq.s32.totalorder %s13, 1
    %p78 = por %p76, %p77
    %p79 = scmp.ne.s32.totalorder %s68, %s69
    %p80 = scmp.eq.s32.totalorder %s13, 0
    %p81 = por %p79, %p80
    %p82 = scmp.ne.s32.totalorder %s68, %s69
    %p83 = scmp.eq.s32.totalorder %s14, 1
    %p84 = por %p82, %p83
    %p86 = scmp.ne.s32.totalorder %s69, %s85
    %p87 = scmp.eq.s32.totalorder %s14, 0
    %p88 = por %p86, %p87
    %p89 = scmp.le.s32.totalorder 1, %s8
    %p90 = scmp.lt.s32.totalorder %s8, 3
    %p91 = pnand %p89, %p90
    %p92 = pneg %p91
    // Predicated region
    $region9: #{ntxent_loss.1} parent=5 // pred_check
      _
    $region10: #{ntxent_loss.1} parent=5 // pred_check_branch
      %94 = sbr.rel (%p91) target = $region12
    $region11: #{ntxent_loss.1} parent=5 // pred_region
      %s95 = ssub.s32 %s8, 1
      // Predicated region
      $region13: #{ntxent_loss.1} parent=11 // pred_check
        %p96 = pneg %p55
      $region14: #{ntxent_loss.1} parent=11 // pred_check_branch
        %98 = sbr.rel (%p96) target = $region16
      $region15: #{ntxent_loss.1} parent=11 // pred_region
        _
      $region16: #{ntxent_loss.1} parent=11 // pred_fallthru
        _
    $region12: #{ntxent_loss.1} parent=5 // pred_fallthru
      _
    %p99 = scmp.lt.s32.totalorder %s8, 2
    // Predicated region
    $region17: #{ntxent_loss.1} parent=5 // pred_check
      %p100 = pneg %p99
    $region18: #{ntxent_loss.1} parent=5 // pred_check_branch
      %102 = sbr.rel (%p100) target = $region20
    $region19: #{ntxent_loss.1} parent=5 // pred_region
      // Predicated region
      $region21: #{ntxent_loss.1} parent=19 // pred_check
        %p103 = pneg %p28
      $region22: #{ntxent_loss.1} parent=19 // pred_check_branch
        %105 = sbr.rel (%p103) target = $region24
      $region23: #{ntxent_loss.1} parent=19 // pred_region
        %p106 = scmp.lt.s32.totalorder %s8, 1
        %s107 = scalar_select %p106, %s8, 1
        %s108 = smul.addr %s107, 4
        %s109 = scalar_lea.vmem %s0, %s108
      $region24: #{ntxent_loss.1} parent=19 // pred_fallthru
        _
    $region20: #{ntxent_loss.1} parent=5 // pred_fallthru
      _
    %p110 = scmp.le.s32.totalorder 1, %s8
    %p111 = scmp.lt.s32.totalorder %s8, 3
    %p112 = pnand %p110, %p111
    %p113 = pneg %p112
    // Predicated region
    $region25: #{ntxent_loss.1} parent=5 // pred_check
      _
    $region26: #{ntxent_loss.1} parent=5 // pred_check_branch
      %115 = sbr.rel (%p112) target = $region28
    $region27: #{ntxent_loss.1} parent=5 // pred_region
      %s116 = ssub.s32 %s8, 1
      %p117 = scmp.lt.s32.totalorder %s13, 1
      %s118 = scalar_select %p117, %s13, 1
      %s119 = smul.addr %s118, 4
      %s120 = scalar_lea.vmem %s0, %s119
      %p121 = pneg %p34
      %p122 = pneg %p31
      %p123 = pneg %p55
      %p124 = pneg %p52
      %p125 = pneg %p81
      %p126 = pneg %p78
      %p127 = scmp.lt.s32.totalorder %s13, 1
      %s128 = scalar_select %p127, %s13, 1
      %s129 = smul.addr %s128, 8
      %s130 = scalar_lea.vmem %s2, %s129
      %p131 = scmp.lt.s32.totalorder %s13, 1
      %s132 = scalar_select %p131, %s13, 1
      %s133 = smul.addr %s132, 4
      %s134 = scalar_lea.vmem %s0, %s133
      %p135 = scmp.lt.s32.totalorder %s13, 1
      %s136 = scalar_select %p135, %s13, 1
      %s137 = smul.addr %s136, 8
      %s138 = scalar_lea.vmem %s2, %s137
      %v140 = vld [vmem:[%s134] sm:$0xf]
      %v141 = vld [vmem:[%s1] sm:$0xf]
      %v142 = vld [vmem:[%s1 + $0x4] sm:$0xf]
      %v145 = vunpack.c.l.b16 %v141
      %v146 = vunpack.c.l.b16 %v142
      %v147 = vpack.c.b16 %v146, %v145
      %vm148 = vcmask 261120
      %v150 = vsel %vm148, %v140, 0
      %v153 = vsel %vm148, %v147, 0
      %155 = vmatprep.subr.bf16.mxu0 0
      %156 = vmatpush1.bf16.xpose.msra.mxu0 %v153
      %157 = vmatprep.subr.bf16.mxu0 0
      %158 = vmatpush1.bf16.xpose.msra.mxu0 0
      %159 = vmatprep.subr.bf16.mxu0 0
      %160 = vmatpush1.bf16.xpose.msra.mxu0 0
      %161 = vmatprep.subr.bf16.mxu0 0
      %162 = vmatpush1.bf16.xpose.msra.mxu0 0
      %163 = vmatprep.subr.bf16.mxu0 0
      %164 = vmatpush1.bf16.xpose.msra.mxu0 0
      %165 = vmatprep.subr.bf16.mxu0 0
      %166 = vmatpush1.bf16.xpose.msra.mxu0 0
      %167 = vmatprep.subr.bf16.mxu0 0
      %168 = vmatpush1.bf16.xpose.msra.mxu0 0
      %169 = vmatprep.subr.bf16.mxu0 0
      %170 = vmatpush1.bf16.xpose.msra.mxu0 0
      %171 = vmatprep.subr.bf16.mxu0 0
      %172 = vmatpush1.bf16.xpose.msra.mxu0 0
      %173 = vmatprep.subr.bf16.mxu0 0
      %174 = vmatpush1.bf16.xpose.msra.mxu0 0
      %175 = vmatprep.subr.bf16.mxu0 0
      %176 = vmatpush1.bf16.xpose.msra.mxu0 0
      %177 = vmatprep.subr.bf16.mxu0 0
      %178 = vmatpush1.bf16.xpose.msra.mxu0 0
      %179 = vmatprep.subr.bf16.mxu0 0
      %180 = vmatpush1.bf16.xpose.msra.mxu0 0
      %181 = vmatprep.subr.bf16.mxu0 0
      %182 = vmatpush1.bf16.xpose.msra.mxu0 0
      %183 = vmatprep.subr.bf16.mxu0 0
      %184 = vmatpush1.bf16.xpose.msra.mxu0 0
      %185 = vmatprep.subr.bf16.mxu0 0
      %186 = vmatpush1.bf16.xpose.msra.mxu0 0
      %187 = vmatprep.mubr.bf16.mxu0 0
      %188 = vmatmul.mubr.bf16.gmra.mrb[0].mxu0 %v150
      %v189 = vpop.f32.mrb[0].mxu0
      %v190 = vadd.f32 0.0, %v189
      %v191 = vpop.f32.mrb[0].mxu0
      %v192 = vpop.f32.mrb[0].mxu0
      %v193 = vpop.f32.mrb[0].mxu0
      %194 = vdwg.mxu0
      %v195 = vmul.f32 %v190, 1.442695
      %v196 = vpow.pop %v195
      %vm197 = vcmask 130048
      %v198 = vsel %vm197, %v196, 0.0
      %199 = vadd.xlane.f32.xlu0 %v198
      %v200 = vpop.xlane.xlu0 %199
      %v201 = vunpack.c.l.bf16 %v140
      %v202 = vmul.f32 %v201, %v201
      %v203 = vsel %vm148, %v202, 0.0
      %204 = vadd.xlane.f32.xlu0 %v203
      %v205 = vpop.xlane.xlu0 %204
      %v206 = vmul.f32 %v205, 1.442695
      %v207 = vpow.pop %v206
      %v208 = vsub.f32 %v200, %v207
      %v209 = vlog2.pop %v208
      %v210 = vmul.f32 %v209, 0.6931472
      %v211 = vsub.f32 0.0, %v210
      %v212 = vrot.slane %v201, 1
      %v213 = vmul.f32 %v201, %v212
      %v214 = vsel %vm148, %v213, 0.0
      %215 = vadd.xlane.f32.xlu0 %v214
      %v216 = vpop.xlane.xlu0 %215
      %v217 = vlaneseq
      %v218 = vshrl.u32 %v217, 7
      %vm219 = vcmp.lt.s32.totalorder %v218, 0
      %v220 = vsub.s32 0, %v218
      %v221 = vsel %vm219, %v220, %v218
      %v222 = vshrl.u32 %v221, 1
      %v223 = vand.u32 %v221, 1
      %v224 = vsub.s32 0, %v223
      %v225 = vsel %vm219, %v224, %v223
      %vm226 = vcmp.ne.s32.totalorder %v225, 0
      %vm227 = vcmp.lt.s32.totalorder %v225, 0
      %vm228 = vmand %vm227, %vm226
      %v229 = vadd.s32 %v225, 2
      %v230 = vsel %vm228, %v229, %v225
      %vm231 = vcmp.eq.s32.totalorder %v230, 0
      %v232 = vrot.slane %v216, 7
      %v233 = vsel %vm231, %v216, %v232
      %v234 = vmul.f32 %v233, 1.442695
      %v235 = vpow.pop %v234
      %v236 = vrcp.pop %v211
      %v237 = vmul.f32 %v235, %v236
      %vm238 = vcmask 7168
      %239 = vst.msk [vmem:[%s138] sm:$0xff] %vm238, %v237
      %p240 = scmp.lt.s32.totalorder %s13, 1
      %s241 = scalar_select %p240, %s13, 1
      %s242 = smul.addr %s241, 8
      %s243 = scalar_lea.vmem %s2, %s242
      // Predicated region
      $region29: #{ntxent_loss.1} parent=27 // pred_check
        %p244 = pneg %p78
      $region30: #{ntxent_loss.1} parent=27 // pred_check_branch
        %246 = sbr.rel (%p244) target = $region32
      $region31: #{ntxent_loss.1} parent=27 // pred_region
        _
      $region32: #{ntxent_loss.1} parent=27 // pred_fallthru
        _
    $region28: #{ntxent_loss.1} parent=5 // pred_fallthru
      _
    %p247 = scmp.le.s32.totalorder 2, %s8
    // Predicated region
    $region33: #{ntxent_loss.1} parent=5 // pred_check
      %p248 = pneg %p247
    $region34: #{ntxent_loss.1} parent=5 // pred_check_branch
      %250 = sbr.rel (%p248) target = $region36
    $region35: #{ntxent_loss.1} parent=5 // pred_region
      %s251 = ssub.s32 %s8, 2
      // Predicated region
      $region37: #{ntxent_loss.1} parent=35 // pred_check
        %p252 = pneg %p84
      $region38: #{ntxent_loss.1} parent=35 // pred_check_branch
        %254 = sbr.rel (%p252) target = $region40
      $region39: #{ntxent_loss.1} parent=35 // pred_region
        %p255 = scmp.lt.s32.totalorder %s14, 1
        %s256 = scalar_select %p255, %s14, 1
        %s257 = smul.addr %s256, 8
        %s258 = scalar_lea.vmem %s2, %s257
      $region40: #{ntxent_loss.1} parent=35 // pred_fallthru
        _
    $region36: #{ntxent_loss.1} parent=5 // pred_fallthru
      _
  $region6: #{ntxent_loss.1} parent=0 // loop_footer
    %s12 = sadd.s32 1, %s8
  $region7: #{ntxent_loss.1} parent=0 // loop_footer_branch
    %7 = sbr.rel target = $region3
  $region8: #{ntxent_loss.1} parent=0 // loop_exit
    _

</llo_original>
